<compile_context>
chip_gen: v7x
topology: tpu7x:2x2x1
jax: 0.10.0
libtpu: 0.0.40
codegen_flags: <defaults>
</compile_context>

<pallas_src>
import functools
import math

import jax
import jax.numpy as jnp
from jax.experimental import pallas as pl
from jax.experimental.pallas import tpu as pltpu

NUM_CLASSES = 10
ALPHA = 1.0       # NCE scale
BETA = 1.0        # ANL scale
A_PARAM = 2.0     # ANL "a"
P_PARAM = 0.7     # ANL "p"

_LOG_CLAMP_MIN = math.log(1e-5)   # log of softmax clamp floor


def _nce_anl_kernel(pred_ref, labels_ref, out_ref, *, alpha, beta, a, pw):
    # pred_ref:   (C, TN)  logits, classes on sublanes, batch on lanes.
    # labels_ref: (1, TN)  int32 class ids; padded columns are -1.
    # out_ref:    (1, TN)  per-row combined loss (0 for padded columns).
    logits = pred_ref[...].astype(jnp.float32)
    labels = labels_ref[...]
    c, tn = logits.shape

    # Numerically stable log-softmax over the class axis (axis=0).
    m = jnp.max(logits, axis=0, keepdims=True)                 # (1, TN)
    z = logits - m
    ez = jnp.exp(z)
    se = jnp.sum(ez, axis=0, keepdims=True)                    # (1, TN)
    logp = z - jnp.log(se)                                     # (C, TN)

    # Select the label entry without materializing a one-hot float tensor.
    classes = jax.lax.broadcasted_iota(jnp.int32, (c, tn), 0)
    is_label = classes == labels                               # (C, TN)
    picked_logp = jnp.sum(jnp.where(is_label, logp, 0.0), axis=0, keepdims=True)
    sum_logp = jnp.sum(logp, axis=0, keepdims=True)            # (1, TN)

    # NCE per row: (-sum(onehot*logp)) / (-sum(logp)).
    nce_row = picked_logp / sum_logp                           # (1, TN)

    # ANL: clamp(softmax, 1e-5, 1) == exp(clip(log_softmax, log(1e-5), 0));
    # never form the (C, TN) softmax divide.
    clogp = jnp.clip(logp, _LOG_CLAMP_MIN, 0.0)                # (C, TN)
    sum_pow = jnp.sum(jnp.exp(pw * clogp), axis=0, keepdims=True)  # sum_c p_c^pw
    picked_clogp = jnp.clip(picked_logp, _LOG_CLAMP_MIN, 0.0)  # (1, TN)
    p_label = jnp.exp(picked_clogp)                            # clamped prob at label
    label_pow = jnp.exp(pw * picked_clogp)                     # p_label^pw
    label_term = jnp.abs(a - p_label) ** pw                    # |a - p_label|^pw
    # sum_c |a*onehot - p|^pw  =  sum_c p_c^pw - p_label^pw + |a - p_label|^pw
    anl_row = sum_pow - label_pow + label_term - (a - 1.0) ** pw   # (1, TN)

    combined = alpha * nce_row + (beta / pw) * anl_row
    valid = labels >= 0                                        # padded columns -> 0
    out_ref[...] = jnp.where(valid, combined, 0.0)


def nce_and_anl(pred, labels, *, alpha=ALPHA, beta=BETA, a=A_PARAM, pw=P_PARAM):
    """pred: (N, C) float (native dtype), labels: (N,) int. Returns scalar f32."""
    n, c = pred.shape
    pred_t = pred.T                                 # (C, N): batch -> lanes
    labels2d = labels.astype(jnp.int32).reshape(1, n)

    # Tile the batch axis: TN multiple of 128, capped at 8192 rows per tile.
    n_pad128 = ((n + 127) // 128) * 128
    tn = min(n_pad128, 8192)
    n_pad = ((n + tn - 1) // tn) * tn
    if n_pad != n:
        pred_t = jnp.pad(pred_t, ((0, 0), (0, n_pad - n)))
        labels2d = jnp.pad(labels2d, ((0, 0), (0, n_pad - n)), constant_values=-1)
    grid = (n_pad // tn,)

    kernel = functools.partial(_nce_anl_kernel, alpha=alpha, beta=beta, a=a, pw=pw)
    per_row = pl.pallas_call(
        kernel,
        out_shape=jax.ShapeDtypeStruct((1, n_pad), jnp.float32),
        grid=grid,
        in_specs=[
            pl.BlockSpec((c, tn), lambda i: (0, i)),   # logits tile (C, TN)
            pl.BlockSpec((1, tn), lambda i: (0, i)),   # labels tile (1, TN)
        ],
        out_specs=pl.BlockSpec((1, tn), lambda i: (0, i)),
        compiler_params=pltpu.CompilerParams(dimension_semantics=("parallel",)),
    )(pred_t, labels2d)

    # Single epilogue: mean over the true batch size (padded rows contribute 0).
    return jnp.sum(per_row) / jnp.float32(n)


def _reference(pred, labels, *, alpha=ALPHA, beta=BETA, num_classes=NUM_CLASSES,
               a=A_PARAM, pw=P_PARAM):
    # Pure-JAX reference mirroring the PyTorch NCEandANL module exactly.
    pred32 = pred.astype(jnp.float32)
    logp = jax.nn.log_softmax(pred32, axis=1)
    onehot = jax.nn.one_hot(labels, num_classes, dtype=jnp.float32)
    nce = jnp.mean(jnp.sum(onehot * logp, axis=1) / jnp.sum(logp, axis=1))
    p = jnp.clip(jax.nn.softmax(pred32, axis=1), 1e-5, 1.0)
    anl_rows = jnp.sum(jnp.abs(a * onehot - p) ** pw, axis=1) - (a - 1.0) ** pw
    anl = jnp.mean(anl_rows) / pw
    return alpha * nce + beta * anl


if __name__ == "__main__":
    key = jax.random.PRNGKey(0)
    kp, kl = jax.random.split(key)
    N, C = 8, NUM_CLASSES
    pred = jax.random.normal(kp, (N, C), dtype=jnp.float32)
    labels = jax.random.randint(kl, (N,), 0, C, dtype=jnp.int32)

    loss = jax.block_until_ready(nce_and_anl(pred, labels))
    ref = jax.block_until_ready(_reference(pred, labels))
    assert jnp.allclose(loss, ref, rtol=1e-5, atol=1e-5), (loss, ref)
    print("KERNEL_OK")
</pallas_src>

<mosaic_0001>
module attributes {stable_mosaic.version = 11 : i64} {
  func.func @_nce_anl_kernel(%arg0: i32, %arg1: memref<10x128xf32, #tpu.memory_space<vmem>>, %arg2: memref<1x128xi32, #tpu.memory_space<vmem>>, %arg3: memref<1x128xf32, #tpu.memory_space<vmem>>) attributes {dimension_semantics = [#tpu.dimension_semantics<parallel>], iteration_bounds = array<i64: 1>, scalar_prefetch = 0 : i64, scratch_operands = 0 : i64, tpu.core_type = #tpu.core_type<tc>, window_params = [{transform_indices = @transform_0, window_bounds = array<i64: 10, 128>}, {transform_indices = @transform_1, window_bounds = array<i64: 1, 128>}, {transform_indices = @transform_2, window_bounds = array<i64: 1, 128>}]} {
    %c0 = arith.constant 0 : index
    %c0_0 = arith.constant 0 : index
    %0 = vector.load %arg1[%c0, %c0_0] : memref<10x128xf32, #tpu.memory_space<vmem>>, vector<10x128xf32>
    %c0_1 = arith.constant 0 : index
    %c0_2 = arith.constant 0 : index
    %1 = vector.load %arg2[%c0_1, %c0_2] : memref<1x128xi32, #tpu.memory_space<vmem>>, vector<1x128xi32>
    %cst = arith.constant dense<0xFF800000> : vector<128xf32>
    %2 = vector.multi_reduction <maximumf>, %0, %cst [0] : vector<10x128xf32> to vector<128xf32>
    %3 = vector.shape_cast %2 : vector<128xf32> to vector<1x128xf32>
    %4 = vector.broadcast %3 : vector<1x128xf32> to vector<10x128xf32>
    %5 = arith.subf %0, %4 : vector<10x128xf32>
    %6 = math.exp %5 : vector<10x128xf32>
    %cst_3 = arith.constant dense<0.000000e+00> : vector<128xf32>
    %7 = vector.multi_reduction <add>, %6, %cst_3 [0] : vector<10x128xf32> to vector<128xf32>
    %8 = vector.shape_cast %7 : vector<128xf32> to vector<1x128xf32>
    %9 = math.log %8 : vector<1x128xf32>
    %10 = vector.broadcast %9 : vector<1x128xf32> to vector<10x128xf32>
    %11 = arith.subf %5, %10 : vector<10x128xf32>
    %12 = tpu.iota {dimensions = array<i32: 0>} : vector<10x128xi32>
    %13 = vector.broadcast %1 : vector<1x128xi32> to vector<10x128xi32>
    %14 = arith.cmpi eq, %12, %13 : vector<10x128xi32>
    %cst_4 = arith.constant 0.000000e+00 : f32
    %15 = vector.broadcast %cst_4 : f32 to vector<10x128xf32>
    %16 = arith.select %14, %11, %15 : vector<10x128xi1>, vector<10x128xf32>
    %cst_5 = arith.constant dense<0.000000e+00> : vector<128xf32>
    %17 = vector.multi_reduction <add>, %16, %cst_5 [0] : vector<10x128xf32> to vector<128xf32>
    %18 = vector.shape_cast %17 : vector<128xf32> to vector<1x128xf32>
    %cst_6 = arith.constant dense<0.000000e+00> : vector<128xf32>
    %19 = vector.multi_reduction <add>, %11, %cst_6 [0] : vector<10x128xf32> to vector<128xf32>
    %20 = vector.shape_cast %19 : vector<128xf32> to vector<1x128xf32>
    %21 = arith.divf %18, %20 : vector<1x128xf32>
    %cst_7 = arith.constant -11.5129251 : f32
    %cst_8 = arith.constant 0.000000e+00 : f32
    %22 = vector.broadcast %cst_7 : f32 to vector<10x128xf32>
    %23 = arith.maximumf %22, %11 : vector<10x128xf32>
    %24 = vector.broadcast %cst_8 : f32 to vector<10x128xf32>
    %25 = arith.minimumf %24, %23 : vector<10x128xf32>
    %cst_9 = arith.constant 0.699999988 : f32
    %26 = vector.broadcast %cst_9 : f32 to vector<10x128xf32>
    %27 = arith.mulf %26, %25 : vector<10x128xf32>
    %28 = math.exp %27 : vector<10x128xf32>
    %cst_10 = arith.constant dense<0.000000e+00> : vector<128xf32>
    %29 = vector.multi_reduction <add>, %28, %cst_10 [0] : vector<10x128xf32> to vector<128xf32>
    %30 = vector.shape_cast %29 : vector<128xf32> to vector<1x128xf32>
    %cst_11 = arith.constant -11.5129251 : f32
    %cst_12 = arith.constant 0.000000e+00 : f32
    %31 = vector.broadcast %cst_11 : f32 to vector<1x128xf32>
    %32 = arith.maximumf %31, %18 : vector<1x128xf32>
    %33 = vector.broadcast %cst_12 : f32 to vector<1x128xf32>
    %34 = arith.minimumf %33, %32 : vector<1x128xf32>
    %35 = math.exp %34 : vector<1x128xf32>
    %cst_13 = arith.constant 0.699999988 : f32
    %36 = vector.broadcast %cst_13 : f32 to vector<1x128xf32>
    %37 = arith.mulf %36, %34 : vector<1x128xf32>
    %38 = math.exp %37 : vector<1x128xf32>
    %cst_14 = arith.constant 2.000000e+00 : f32
    %39 = vector.broadcast %cst_14 : f32 to vector<1x128xf32>
    %40 = arith.subf %39, %35 : vector<1x128xf32>
    %41 = math.absf %40 : vector<1x128xf32>
    %cst_15 = arith.constant 0.699999988 : f32
    %42 = vector.broadcast %cst_15 : f32 to vector<1x128xf32>
    %43 = math.powf %41, %42 : vector<1x128xf32>
    %44 = arith.subf %30, %38 : vector<1x128xf32>
    %45 = arith.addf %44, %43 : vector<1x128xf32>
    %cst_16 = arith.constant 1.000000e+00 : f32
    %46 = vector.broadcast %cst_16 : f32 to vector<1x128xf32>
    %47 = arith.subf %45, %46 : vector<1x128xf32>
    %cst_17 = arith.constant 1.000000e+00 : f32
    %48 = vector.broadcast %cst_17 : f32 to vector<1x128xf32>
    %49 = arith.mulf %48, %21 : vector<1x128xf32>
    %cst_18 = arith.constant 1.42857146 : f32
    %50 = vector.broadcast %cst_18 : f32 to vector<1x128xf32>
    %51 = arith.mulf %50, %47 : vector<1x128xf32>
    %52 = arith.addf %49, %51 : vector<1x128xf32>
    %c0_i32 = arith.constant 0 : i32
    %53 = vector.broadcast %c0_i32 : i32 to vector<1x128xi32>
    %54 = arith.cmpi sge, %1, %53 : vector<1x128xi32>
    %cst_19 = arith.constant 0.000000e+00 : f32
    %55 = vector.broadcast %cst_19 : f32 to vector<1x128xf32>
    %56 = arith.select %54, %52, %55 : vector<1x128xi1>, vector<1x128xf32>
    %c0_20 = arith.constant 0 : index
    %c0_21 = arith.constant 0 : index
    %57 = vector.load %arg3[%c0_20, %c0_21] : memref<1x128xf32, #tpu.memory_space<vmem>>, vector<1x128xf32>
    tpu.vector_store %arg3[%c0_20, %c0_21], %56 {strides = array<i32>} : memref<1x128xf32, #tpu.memory_space<vmem>>, vector<1x128xf32>,
    return
  }
  func.func @transform_0(%arg0: i32) -> (i32, i32) {
    %c0_i32 = arith.constant 0 : i32
    %c0_i32_0 = arith.constant 0 : i32
    return %c0_i32, %arg0 : i32, i32
  }
  func.func @transform_1(%arg0: i32) -> (i32, i32) {
    %c0_i32 = arith.constant 0 : i32
    %c0_i32_0 = arith.constant 0 : i32
    return %c0_i32, %arg0 : i32, i32
  }
  func.func @transform_2(%arg0: i32) -> (i32, i32) {
    %c0_i32 = arith.constant 0 : i32
    %c0_i32_0 = arith.constant 0 : i32
    return %c0_i32, %arg0 : i32, i32
  }
}

</mosaic_0001>

<llo_original>
// kernel: tpu_custom_call.1
$region0: #{tpu_custom_call.1}
  #allocation0 [shape = 'u32[]', space=smem, size = 0x4, offset = 0x4, fixed_abs, tag = 'smem constant byte address 0x4 - core index']
  #allocation1 [shape = 'u32[144,128]{1,0:T(1,128)}', space=vmem, size = 0x12000, scoped, tag = 'internal scratch']
  %s0 = inlined_call_operand.hbm [shape: f32[10,128], index: 0, kind: input, shape index: {}]
  %s1 = inlined_call_operand.vmem [shape: s32[1,128], index: 1, kind: input, shape index: {}]
  %s2 = inlined_call_operand.hbm [shape: f32[1,128], index: 2, kind: output, shape index: {}]
  %s3 = sld [smem:[#allocation0]]
  $region22: #{tpu_custom_call.1} parent=0
    _
  %s5 = ssub.s32 1, %s3
  %s6 = scalar_select 0, %s5, %s3
  $region1: #{tpu_custom_call.1} parent=0
    #allocation2 [shape = 'u8[8192]{0}', space=vmem, size = 0x2000, scoped, tag = 'input window, operand 0, single buffered']
    #allocation3 [shape = 's32[1]{0}', space=sflag, size = 0x4, scoped, tag = 'scoped memory for tpu_custom_call.1']
    #allocation4 [shape = 's32[1]{0}', space=sflag, size = 0x4, scoped, tag = 'scoped memory for tpu_custom_call.1']
    #allocation5 [shape = 'u8[512]{0}', space=vmem, size = 0x400, scoped, tag = 'output window, operand 0, single buffered']
    %7 = vsyncpa [#allocation3], 0
    %8 = vsyncpa [#allocation4], 0
    // Predicated region
    $region2: #{tpu_custom_call.1} parent=1 // pred_check
      _
    $region3: #{tpu_custom_call.1} parent=1 // pred_check_branch
      %10 = sbr.rel (0) target = $region5
    $region4: #{tpu_custom_call.1} parent=1 // pred_region
      %s12 = ssub.s32 256, 256
      %13 = vsyncadd [#allocation3], %s12
      %s14 = sshll.u32 [#allocation2], 4
      %s15 = int_to_ptr.vmem [resolvable:$true] %s14
      %20 = dma.hbm_to_vmem [thread:$0]  %s0, 256, %s15, [#allocation3], 128, 128, 8
    $region5: #{tpu_custom_call.1} parent=1 // pred_fallthru
      _
    // Predicated region
    $region6: #{tpu_custom_call.1} parent=1 // pred_check
      _
    $region7: #{tpu_custom_call.1} parent=1 // pred_check_branch
      %22 = sbr.rel (0) target = $region9
    $region8: #{tpu_custom_call.1} parent=1 // pred_region
      _
    $region9: #{tpu_custom_call.1} parent=1 // pred_fallthru
      _
    // Predicated region
    $region10: #{tpu_custom_call.1} parent=1 // pred_check
      _
    $region11: #{tpu_custom_call.1} parent=1 // pred_check_branch
      %24 = sbr.rel (0) target = $region13
    $region12: #{tpu_custom_call.1} parent=1 // pred_region
      %25 = dma.done [#allocation3], 256
    $region13: #{tpu_custom_call.1} parent=1 // pred_fallthru
      _
    %v26 = vld [vmem:[#allocation2] sm:$0xff]
    %v27 = vld [vmem:[#allocation2 + $0x8] sm:$0x3]
    %v28 = vld [vmem:[%s1] sm:$0x1]
    %vm29 = vcmask 1041408
    %v30 = vsel %vm29, %v27, -inf
    %v31 = vmax.f32 %v26, %v30
    %v32 = vrot.slane %v31, 4
    %v33 = vmax.f32 %v31, %v32
    %v34 = vrot.slane %v33, 2
    %v35 = vmax.f32 %v33, %v34
    %v36 = vrot.slane %v35, 1
    %v37 = vmax.f32 %v35, %v36
    %v38 = vsub.f32 %v26, %v37
    %v39 = vsub.f32 %v27, %v37
    %v40 = vmul.f32 %v38, 1.442695
    %v41 = vpow.pop %v40
    %v42 = vmul.f32 %v39, 1.442695
    %v43 = vpow.pop %v42
    %v44 = vsel %vm29, %v43, 0.0
    %v45 = vadd.f32 %v41, %v44
    %v46 = vrot.slane %v45, 4
    %v47 = vadd.f32 %v45, %v46
    %v48 = vrot.slane %v47, 2
    %v49 = vadd.f32 %v47, %v48
    %v50 = vrot.slane %v49, 1
    %v51 = vadd.f32 %v49, %v50
    %v52 = vlog2.pop %v51
    %v53 = vmul.f32 %v52, 0.6931472
    %v54 = vsub.f32 %v38, %v53
    %v55 = vsub.f32 %v39, %v53
    %v56 = vlaneseq
    %v57 = vshrl.u32 %v56, 7
    %v58 = vadd.s32 %v57, 8
    %v59 = vlaneseq
    %v60 = vshrl.u32 %v59, 7
    %v61 = vsub.s32 0, %v60
    %v62 = vrot.slane %v28, %v61
    %vm63 = vcmp.eq.s32.totalorder %v57, %v62
    %vm64 = vcmp.eq.s32.totalorder %v58, %v62
    %v65 = vsel %vm63, %v54, 0.0
    %v66 = vsel %vm64, %v55, 0.0
    %v67 = vsel %vm29, %v66, 0.0
    %v68 = vadd.f32 %v65, %v67
    %v69 = vrot.slane %v68, 4
    %v70 = vadd.f32 %v68, %v69
    %v71 = vrot.slane %v70, 2
    %v72 = vadd.f32 %v70, %v71
    %v73 = vrot.slane %v72, 1
    %v74 = vadd.f32 %v72, %v73
    %v75 = vsel %vm29, %v55, 0.0
    %v76 = vadd.f32 %v54, %v75
    %v77 = vrot.slane %v76, 4
    %v78 = vadd.f32 %v76, %v77
    %v79 = vrot.slane %v78, 2
    %v80 = vadd.f32 %v78, %v79
    %v81 = vrot.slane %v80, 1
    %v82 = vadd.f32 %v80, %v81
    %v83 = vrcp.pop %v82
    %v84 = vmul.f32 %v74, %v83
    %v85 = vmax.f32 %v54, -11.512925
    %v86 = vmax.f32 %v55, -11.512925
    %v87 = vmin.f32 %v85, 0.0
    %v88 = vmin.f32 %v86, 0.0
    %v89 = vmul.f32 %v87, 0.7
    %v90 = vmul.f32 %v88, 0.7
    %v91 = vmul.f32 %v89, 1.442695
    %v92 = vpow.pop %v91
    %v93 = vmul.f32 %v90, 1.442695
    %v94 = vpow.pop %v93
    %v95 = vsel %vm29, %v94, 0.0
    %v96 = vadd.f32 %v92, %v95
    %v97 = vrot.slane %v96, 4
    %v98 = vadd.f32 %v96, %v97
    %v99 = vrot.slane %v98, 2
    %v100 = vadd.f32 %v98, %v99
    %v101 = vrot.slane %v100, 1
    %v102 = vadd.f32 %v100, %v101
    %v103 = vmax.f32 %v74, -11.512925
    %v104 = vmin.f32 %v103, 0.0
    %v105 = vmul.f32 %v104, 1.442695
    %v106 = vpow.pop %v105
    %v107 = vmul.f32 %v104, 0.7
    %v108 = vmul.f32 %v107, 1.442695
    %v109 = vpow.pop %v108
    %v110 = vsub.f32 2.0, %v106
    %v111 = vand.u32 2147483647, %v110
    %v112 = vpow.f32 %v111, 0.7
    %v113 = vsub.f32 %v102, %v109
    %v114 = vadd.f32 %v113, %v112
    %v115 = vsub.f32 %v114, 1.0
    %v116 = vmul.f32 %v115, 1.4285715
    %v117 = vadd.f32 %v84, %v116
    %vm118 = vcmp.ge.s32.totalorder %v28, 0
    %v119 = vsel %vm118, %v117, 0.0
    %120 = vst [vmem:[#allocation5] sm:$0x1] %v119
    // Predicated region
    $region14: #{tpu_custom_call.1} parent=1 // pred_check
      _
    $region15: #{tpu_custom_call.1} parent=1 // pred_check_branch
      %122 = sbr.rel (0) target = $region17
    $region16: #{tpu_custom_call.1} parent=1 // pred_region
      %s124 = ssub.s32 16, 16
      %125 = vsyncadd [#allocation4], %s124
      %s127 = sshll.u32 [#allocation5], 4
      %s128 = int_to_ptr.vmem [resolvable:$true] %s127
      %130 = dma.vmem_to_hbm [thread:$0]  %s128, 16, %s2, [#allocation4]
    $region17: #{tpu_custom_call.1} parent=1 // pred_fallthru
      _
    // Predicated region
    $region18: #{tpu_custom_call.1} parent=1 // pred_check
      _
    $region19: #{tpu_custom_call.1} parent=1 // pred_check_branch
      %132 = sbr.rel (0) target = $region21
    $region20: #{tpu_custom_call.1} parent=1 // pred_region
      %133 = dma.done [#allocation4], 16
    $region21: #{tpu_custom_call.1} parent=1 // pred_fallthru
      _
    %134 = vsyncpa [#allocation3], 1
    %135 = vsyncpa [#allocation4], 1

</llo_original>
